<compile_context>
chip_gen: v7x
topology: tpu7x:2x2x1
jax: 0.10.0
libtpu: 0.0.40
codegen_flags: <defaults>
</compile_context>

<pallas_src>
import jax
import jax.numpy as jnp
from jax import lax
from jax.experimental import pallas as pl
from jax.experimental.pallas import tpu as pltpu

EPS = 1e-5  # nn.LayerNorm default


# ----------------------------------------------------------------------------
# Generic path: residual add + LayerNorm on a lane-dense flattened layout.
# ----------------------------------------------------------------------------
def _add_norm_kernel(x_ref, y_ref, gamma_ref, beta_ref, o_ref):
    # x/y/o: (Bt, N) with N = S*E (lane-dense); gamma/beta: (1, N), resident.
    # .astype is a no-op when inputs are already f32 (no extra VALU work on v5e).
    s = x_ref[...].astype(jnp.float32) + y_ref[...].astype(jnp.float32)

    # One-pass statistics per row (one row == one (S, E) LayerNorm plane),
    # f32 accumulators, single traversal of the tile.
    inv_n = 1.0 / s.shape[-1]
    total = jnp.sum(s, axis=-1, keepdims=True)          # (Bt, 1)
    total_sq = jnp.sum(s * s, axis=-1, keepdims=True)   # (Bt, 1)
    mean = total * inv_n
    var = total_sq * inv_n - mean * mean
    inv = lax.rsqrt(var + EPS)

    gamma = gamma_ref[...].astype(jnp.float32)           # (1, N) broadcasts over rows
    beta = beta_ref[...].astype(jnp.float32)
    o_ref[...] = ((s - mean) * inv * gamma + beta).astype(o_ref.dtype)


def add_norm(x, sub_output, gamma, beta, *, target_block_bytes=4 * 1024 * 1024):
    """layer_norm(x + sub_output), normalization over (seq_len, embed_dim)."""
    B, S, E = x.shape
    N = S * E

    # Lane-dense layout plumbing: the LayerNorm reduces over the whole (S, E)
    # plane anyway, so flattening to (B, S*E) is pure layout plumbing that
    # turns E=32-wide masked stores into full-lane stores whenever S*E % 128 == 0.
    x2 = x.reshape(B, N)
    y2 = sub_output.reshape(B, N)
    g2 = gamma.reshape(1, N)
    b2 = beta.reshape(1, N)

    # Several batch rows per grid step; cap each input block at
    # ~target_block_bytes so (3 pipelined tensors x 2 buffers + gamma/beta)
    # stays well inside the scoped-VMEM limit on all generations (incl. v7x's
    # 64 MiB physical).  Shrink to a divisor of B to avoid partial blocks.
    bytes_per_row = N * max(x.dtype.itemsize, 4)
    bt = max(1, min(B, target_block_bytes // bytes_per_row))
    while B % bt:
        bt -= 1
    # TODO(synk): for huge planes (S*E*4B approaching VMEM) this needs a
    # plane-tiled two-pass accumulation variant instead of full-plane blocks.

    out2 = pl.pallas_call(
        _add_norm_kernel,
        out_shape=jax.ShapeDtypeStruct((B, N), x.dtype),
        grid_spec=pltpu.PrefetchScalarGridSpec(
            num_scalar_prefetch=0,
            grid=(B // bt,),
            in_specs=[
                pl.BlockSpec((bt, N), lambda i: (i, 0)),   # x
                pl.BlockSpec((bt, N), lambda i: (i, 0)),   # sub_output
                pl.BlockSpec((1, N), lambda i: (0, 0)),    # gamma (revisited, never re-DMA'd)
                pl.BlockSpec((1, N), lambda i: (0, 0)),    # beta
            ],
            out_specs=pl.BlockSpec((bt, N), lambda i: (i, 0)),
        ),
        compiler_params=pltpu.CompilerParams(
            dimension_semantics=("parallel",),
            vmem_limit_bytes=64 << 20,   # default scoped limit is only 16/32 MiB
        ),
    )(x2, y2, g2, b2)
    return out2.reshape(B, S, E)


# ----------------------------------------------------------------------------
# Fused path: sub_layer == Linear is done in-kernel on the MXU.
# ----------------------------------------------------------------------------
def _add_norm_fused_linear_kernel(x_ref, w_ref, gamma_ref, beta_ref, o_ref):
    # x/o: (S, E) plane of one batch element (batch dim squeezed by BlockSpec);
    # w: (E, E) sub-layer weight; gamma/beta: (S, E), resident.
    x = x_ref[...].astype(jnp.float32)
    w = w_ref[...].astype(jnp.float32)

    # Fused sub_layer: residual + Linear on the otherwise-idle MXU; sub_output
    # is never written to / re-read from HBM.
    s = x + jnp.dot(x, w, preferred_element_type=jnp.float32)

    inv_n = 1.0 / s.size
    total = jnp.sum(s, keepdims=True)            # (1, 1) full-plane statistics
    total_sq = jnp.sum(s * s, keepdims=True)
    mean = total * inv_n
    var = total_sq * inv_n - mean * mean
    inv = lax.rsqrt(var + EPS)

    out = (s - mean) * inv * gamma_ref[...].astype(jnp.float32) \
        + beta_ref[...].astype(jnp.float32)
    o_ref[...] = out.astype(o_ref.dtype)


def add_norm_fused_linear(x, w, gamma, beta):
    """layer_norm(x + x @ w): the Linear sub_layer is fused into the kernel."""
    B, S, E = x.shape
    # Note: for large B one would batch several planes per grid step (einsum
    # 'bse,ef->bsf'); kept one plane per step here for simplicity/robustness.
    return pl.pallas_call(
        _add_norm_fused_linear_kernel,
        out_shape=jax.ShapeDtypeStruct((B, S, E), x.dtype),
        grid_spec=pltpu.PrefetchScalarGridSpec(
            num_scalar_prefetch=0,
            grid=(B,),
            in_specs=[
                pl.BlockSpec((None, S, E), lambda b: (b, 0, 0)),  # x (batch dim squeezed)
                pl.BlockSpec((E, E), lambda b: (0, 0)),           # W (resident)
                pl.BlockSpec((S, E), lambda b: (0, 0)),           # gamma
                pl.BlockSpec((S, E), lambda b: (0, 0)),           # beta
            ],
            out_specs=pl.BlockSpec((None, S, E), lambda b: (b, 0, 0)),
        ),
        compiler_params=pltpu.CompilerParams(
            dimension_semantics=("parallel",),
            vmem_limit_bytes=64 << 20,
        ),
    )(x, w, gamma, beta)


# ----------------------------------------------------------------------------
# Pure-JAX reference (matches nn.LayerNorm([S, E]) applied to x + sub_output).
# ----------------------------------------------------------------------------
def add_norm_ref(x, sub_output, gamma, beta):
    s = (x + sub_output).astype(jnp.float32)
    mean = jnp.mean(s, axis=(1, 2), keepdims=True)
    var = jnp.mean((s - mean) ** 2, axis=(1, 2), keepdims=True)
    normed = (s - mean) * lax.rsqrt(var + EPS)
    return (normed * gamma[None] + beta[None]).astype(x.dtype)


if __name__ == "__main__":
    B, S, E = 2, 8, 32  # batch, seq_len, embed_dim  (S*E = 256, lane-dense)

    key = jax.random.PRNGKey(0)
    kx, kw, kg, kb = jax.random.split(key, 4)

    x = jax.random.normal(kx, (B, S, E), dtype=jnp.float32)

    # sub_layer: deterministic small linear layer.
    W = jax.random.normal(kw, (E, E), dtype=jnp.float32) * 0.1
    sub_layer = lambda t: t @ W

    # LayerNorm affine params (ones/zeros, deterministically perturbed).
    gamma = jnp.ones((S, E), jnp.float32) + 0.01 * jax.random.normal(kg, (S, E))
    beta = jnp.zeros((S, E), jnp.float32) + 0.01 * jax.random.normal(kb, (S, E))

    # Path 1: generic AddNorm (arbitrary sub_layer applied as plain-JAX glue).
    sub_output = sub_layer(x)
    out_generic = jax.block_until_ready(add_norm(x, sub_output, gamma, beta))

    # Path 2: fused AddNorm for the Linear sub_layer (matmul on the MXU).
    out_fused = jax.block_until_ready(add_norm_fused_linear(x, W, gamma, beta))

    ref = add_norm_ref(x, sub_output, gamma, beta)
    assert out_generic.shape == (B, S, E)
    assert out_fused.shape == (B, S, E)
    assert jnp.allclose(out_generic, ref, atol=1e-4, rtol=1e-4), "generic mismatch"
    # Looser tolerance: the in-kernel MXU matmul may use bf16-input passes,
    # slightly differing from the XLA matmul used to build the reference.
    assert jnp.allclose(out_fused, ref, atol=2e-2, rtol=2e-2), "fused mismatch"

    print("KERNEL_OK")
</pallas_src>

<mosaic_0001>
module attributes {stable_mosaic.version = 11 : i64} {
  func.func @_add_norm_kernel(%arg0: i32, %arg1: memref<2x256xf32, #tpu.memory_space<vmem>>, %arg2: memref<2x256xf32, #tpu.memory_space<vmem>>, %arg3: memref<1x256xf32, #tpu.memory_space<vmem>>, %arg4: memref<1x256xf32, #tpu.memory_space<vmem>>, %arg5: memref<2x256xf32, #tpu.memory_space<vmem>>) attributes {dimension_semantics = [#tpu.dimension_semantics<parallel>], iteration_bounds = array<i64: 1>, scalar_prefetch = 0 : i64, scratch_operands = 0 : i64, tpu.core_type = #tpu.core_type<tc>, window_params = [{transform_indices = @transform_0, window_bounds = array<i64: 2, 256>}, {transform_indices = @transform_1, window_bounds = array<i64: 2, 256>}, {pipeline_mode = #tpu.pipeline_mode<synchronous>, transform_indices = @transform_2, window_bounds = array<i64: 1, 256>}, {pipeline_mode = #tpu.pipeline_mode<synchronous>, transform_indices = @transform_3, window_bounds = array<i64: 1, 256>}, {transform_indices = @transform_4, window_bounds = array<i64: 2, 256>}]} {
    %c0 = arith.constant 0 : index
    %c0_0 = arith.constant 0 : index
    %0 = vector.load %arg1[%c0, %c0_0] : memref<2x256xf32, #tpu.memory_space<vmem>>, vector<2x256xf32>
    %c0_1 = arith.constant 0 : index
    %c0_2 = arith.constant 0 : index
    %1 = vector.load %arg2[%c0_1, %c0_2] : memref<2x256xf32, #tpu.memory_space<vmem>>, vector<2x256xf32>
    %2 = arith.addf %0, %1 : vector<2x256xf32>
    %cst = arith.constant dense<0.000000e+00> : vector<2xf32>
    %3 = vector.multi_reduction <add>, %2, %cst [1] : vector<2x256xf32> to vector<2xf32>
    %4 = vector.shape_cast %3 : vector<2xf32> to vector<2x1xf32>
    %5 = arith.mulf %2, %2 : vector<2x256xf32>
    %cst_3 = arith.constant dense<0.000000e+00> : vector<2xf32>
    %6 = vector.multi_reduction <add>, %5, %cst_3 [1] : vector<2x256xf32> to vector<2xf32>
    %7 = vector.shape_cast %6 : vector<2xf32> to vector<2x1xf32>
    %cst_4 = arith.constant 3.906250e-03 : f32
    %8 = vector.broadcast %cst_4 : f32 to vector<2x1xf32>
    %9 = arith.mulf %4, %8 : vector<2x1xf32>
    %cst_5 = arith.constant 3.906250e-03 : f32
    %10 = vector.broadcast %cst_5 : f32 to vector<2x1xf32>
    %11 = arith.mulf %7, %10 : vector<2x1xf32>
    %12 = arith.mulf %9, %9 : vector<2x1xf32>
    %13 = arith.subf %11, %12 : vector<2x1xf32>
    %cst_6 = arith.constant 9.99999974E-6 : f32
    %14 = vector.broadcast %cst_6 : f32 to vector<2x1xf32>
    %15 = arith.addf %13, %14 : vector<2x1xf32>
    %16 = math.rsqrt %15 : vector<2x1xf32>
    %c0_7 = arith.constant 0 : index
    %c0_8 = arith.constant 0 : index
    %17 = vector.load %arg3[%c0_7, %c0_8] : memref<1x256xf32, #tpu.memory_space<vmem>>, vector<1x256xf32>
    %c0_9 = arith.constant 0 : index
    %c0_10 = arith.constant 0 : index
    %18 = vector.load %arg4[%c0_9, %c0_10] : memref<1x256xf32, #tpu.memory_space<vmem>>, vector<1x256xf32>
    %19 = vector.broadcast %9 : vector<2x1xf32> to vector<2x256xf32>
    %20 = arith.subf %2, %19 : vector<2x256xf32>
    %21 = vector.broadcast %16 : vector<2x1xf32> to vector<2x256xf32>
    %22 = arith.mulf %20, %21 : vector<2x256xf32>
    %23 = vector.broadcast %17 : vector<1x256xf32> to vector<2x256xf32>
    %24 = arith.mulf %22, %23 : vector<2x256xf32>
    %25 = vector.broadcast %18 : vector<1x256xf32> to vector<2x256xf32>
    %26 = arith.addf %24, %25 : vector<2x256xf32>
    %c0_11 = arith.constant 0 : index
    %c0_12 = arith.constant 0 : index
    %27 = vector.load %arg5[%c0_11, %c0_12] : memref<2x256xf32, #tpu.memory_space<vmem>>, vector<2x256xf32>
    tpu.vector_store %arg5[%c0_11, %c0_12], %26 {strides = array<i32>} : memref<2x256xf32, #tpu.memory_space<vmem>>, vector<2x256xf32>,
    return
  }
  func.func @transform_0(%arg0: i32) -> (i32, i32) {
    %c0_i32 = arith.constant 0 : i32
    %c0_i32_0 = arith.constant 0 : i32
    return %arg0, %c0_i32 : i32, i32
  }
  func.func @transform_1(%arg0: i32) -> (i32, i32) {
    %c0_i32 = arith.constant 0 : i32
    %c0_i32_0 = arith.constant 0 : i32
    return %arg0, %c0_i32 : i32, i32
  }
  func.func @transform_2(%arg0: i32) -> (i32, i32) {
    %c0_i32 = arith.constant 0 : i32
    %c0_i32_0 = arith.constant 0 : i32
    %c0_i32_1 = arith.constant 0 : i32
    return %c0_i32, %c0_i32_0 : i32, i32
  }
  func.func @transform_3(%arg0: i32) -> (i32, i32) {
    %c0_i32 = arith.constant 0 : i32
    %c0_i32_0 = arith.constant 0 : i32
    %c0_i32_1 = arith.constant 0 : i32
    return %c0_i32, %c0_i32_0 : i32, i32
  }
  func.func @transform_4(%arg0: i32) -> (i32, i32) {
    %c0_i32 = arith.constant 0 : i32
    %c0_i32_0 = arith.constant 0 : i32
    return %arg0, %c0_i32 : i32, i32
  }
}

</mosaic_0001>

<llo_original>
// kernel: tpu_custom_call.1
$region0: #{tpu_custom_call.1}
  #allocation0 [shape = 'u32[]', space=smem, size = 0x4, offset = 0x4, fixed_abs, tag = 'smem constant byte address 0x4 - core index']
  #allocation1 [shape = 'u32[144,128]{1,0:T(1,128)}', space=vmem, size = 0x12000, scoped, tag = 'internal scratch']
  %s0 = inlined_call_operand.hbm [shape: f32[2,256], index: 0, kind: input, shape index: {}]
  %s1 = inlined_call_operand.hbm [shape: f32[2,256], index: 1, kind: input, shape index: {}]
  %s2 = inlined_call_operand.hbm [shape: f32[1,256], index: 2, kind: input, shape index: {}]
  %s3 = inlined_call_operand.hbm [shape: f32[1,256], index: 3, kind: input, shape index: {}]
  %s4 = inlined_call_operand.hbm [shape: f32[2,256], index: 4, kind: output, shape index: {}]
  %s5 = sld [smem:[#allocation0]]
  $region42: #{tpu_custom_call.1} parent=0
    _
  %s7 = ssub.s32 1, %s5
  %s8 = scalar_select 0, %s7, %s5
  $region1: #{tpu_custom_call.1} parent=0
    #allocation2 [shape = 'u8[2048]{0}', space=vmem, size = 0x800, scoped, tag = 'input window, operand 0, single buffered']
    #allocation3 [shape = 's32[1]{0}', space=sflag, size = 0x4, scoped, tag = 'scoped memory for tpu_custom_call.1']
    #allocation4 [shape = 's32[1]{0}', space=sflag, size = 0x4, scoped, tag = 'scoped memory for tpu_custom_call.1']
    #allocation5 [shape = 'u8[2048]{0}', space=vmem, size = 0x800, scoped, tag = 'input window, operand 1, single buffered']
    #allocation6 [shape = 's32[1]{0}', space=sflag, size = 0x4, scoped, tag = 'scoped memory for tpu_custom_call.1']
    #allocation7 [shape = 'u8[1024]{0}', space=vmem, size = 0x400, scoped, tag = 'input window, operand 2, single buffered']
    #allocation8 [shape = 'u8[1024]{0}', space=vmem, size = 0x400, scoped, tag = 'input window, operand 3, single buffered']
    #allocation9 [shape = 's32[1]{0}', space=sflag, size = 0x4, scoped, tag = 'scoped memory for tpu_custom_call.1']
    #allocation10 [shape = 'u8[2048]{0}', space=vmem, size = 0x800, scoped, tag = 'output window, operand 0, single buffered']
    %9 = vsyncpa [#allocation3], 0
    %10 = vsyncpa [#allocation6], 0
    %11 = vsyncpa [#allocation9], 0
    %12 = vsyncpa [#allocation4], 0
    // Predicated region
    $region2: #{tpu_custom_call.1} parent=1 // pred_check
      _
    $region3: #{tpu_custom_call.1} parent=1 // pred_check_branch
      %14 = sbr.rel (0) target = $region5
    $region4: #{tpu_custom_call.1} parent=1 // pred_region
      %s16 = ssub.s32 64, 64
      %17 = vsyncadd [#allocation3], %s16
      %s19 = sshll.u32 [#allocation2], 4
      %s20 = int_to_ptr.vmem [resolvable:$true] %s19
      %22 = dma.hbm_to_vmem [thread:$0]  %s0, 64, %s20, [#allocation3]
    $region5: #{tpu_custom_call.1} parent=1 // pred_fallthru
      _
    // Predicated region
    $region6: #{tpu_custom_call.1} parent=1 // pred_check
      _
    $region7: #{tpu_custom_call.1} parent=1 // pred_check_branch
      %24 = sbr.rel (0) target = $region9
    $region8: #{tpu_custom_call.1} parent=1 // pred_region
      %s26 = ssub.s32 64, 64
      %27 = vsyncadd [#allocation6], %s26
      %s29 = sshll.u32 [#allocation5], 4
      %s30 = int_to_ptr.vmem [resolvable:$true] %s29
      %32 = dma.hbm_to_vmem [thread:$0]  %s1, 64, %s30, [#allocation6]
    $region9: #{tpu_custom_call.1} parent=1 // pred_fallthru
      _
    // Predicated region
    $region10: #{tpu_custom_call.1} parent=1 // pred_check
      _
    $region11: #{tpu_custom_call.1} parent=1 // pred_check_branch
      %34 = sbr.rel (0) target = $region13
    $region12: #{tpu_custom_call.1} parent=1 // pred_region
      %s36 = ssub.s32 32, 32
      %37 = vsyncadd [#allocation6], %s36
      %s39 = sshll.u32 [#allocation7], 4
      %s40 = int_to_ptr.vmem [resolvable:$true] %s39
      %42 = dma.hbm_to_vmem [thread:$0]  %s2, 32, %s40, [#allocation6]
    $region13: #{tpu_custom_call.1} parent=1 // pred_fallthru
      _
    // Predicated region
    $region14: #{tpu_custom_call.1} parent=1 // pred_check
      _
    $region15: #{tpu_custom_call.1} parent=1 // pred_check_branch
      %44 = sbr.rel (0) target = $region17
    $region16: #{tpu_custom_call.1} parent=1 // pred_region
      %s46 = ssub.s32 32, 32
      %47 = vsyncadd [#allocation9], %s46
      %s49 = sshll.u32 [#allocation8], 4
      %s50 = int_to_ptr.vmem [resolvable:$true] %s49
      %52 = dma.hbm_to_vmem [thread:$0]  %s3, 32, %s50, [#allocation9]
    $region17: #{tpu_custom_call.1} parent=1 // pred_fallthru
      _
    // Predicated region
    $region18: #{tpu_custom_call.1} parent=1 // pred_check
      _
    $region19: #{tpu_custom_call.1} parent=1 // pred_check_branch
      %54 = sbr.rel (0) target = $region21
    $region20: #{tpu_custom_call.1} parent=1 // pred_region
      %55 = dma.done [#allocation3], 64
    $region21: #{tpu_custom_call.1} parent=1 // pred_fallthru
      _
    // Predicated region
    $region22: #{tpu_custom_call.1} parent=1 // pred_check
      _
    $region23: #{tpu_custom_call.1} parent=1 // pred_check_branch
      %57 = sbr.rel (0) target = $region25
    $region24: #{tpu_custom_call.1} parent=1 // pred_region
      %58 = dma.done [#allocation6], 64
    $region25: #{tpu_custom_call.1} parent=1 // pred_fallthru
      _
    // Predicated region
    $region26: #{tpu_custom_call.1} parent=1 // pred_check
      _
    $region27: #{tpu_custom_call.1} parent=1 // pred_check_branch
      %60 = sbr.rel (0) target = $region29
    $region28: #{tpu_custom_call.1} parent=1 // pred_region
      %61 = dma.done [#allocation6], 32
    $region29: #{tpu_custom_call.1} parent=1 // pred_fallthru
      _
    // Predicated region
    $region30: #{tpu_custom_call.1} parent=1 // pred_check
      _
    $region31: #{tpu_custom_call.1} parent=1 // pred_check_branch
      %63 = sbr.rel (0) target = $region33
    $region32: #{tpu_custom_call.1} parent=1 // pred_region
      %64 = dma.done [#allocation9], 32
    $region33: #{tpu_custom_call.1} parent=1 // pred_fallthru
      _
    %v65 = vld [vmem:[#allocation2] sm:$0xf]
    %v66 = vld [vmem:[#allocation5] sm:$0xf]
    %v67 = vadd.f32 %v65, %v66
    %v70 = vunpack.c.l.s4 1983009808
    %v71 = vunpack.c.0.s8 %v70
    %v72 = vlaneseq
    %v73 = vshrl.u32 %v72, 7
    %v74 = vsub.s32 %v71, %v73
    %v75 = vrot.slane %v67, %v74
    %v76 = vcombine.high %v75, %v75
    %vm79 = vcmask 1041408
    %v80 = vsel %vm79, %v75, 0.0
    %v81 = vsel %vm79, %v76, 0.0
    %v82 = vadd.f32 %v80, %v81
    %83 = vadd.xlane.f32.xlu0 %v82
    %v84 = vpop.xlane.xlu0 %83
    %v85 = vmul.f32 %v67, %v67
    %v88 = vunpack.c.l.s4 1983009808
    %v89 = vunpack.c.0.s8 %v88
    %v90 = vlaneseq
    %v91 = vshrl.u32 %v90, 7
    %v92 = vsub.s32 %v89, %v91
    %v93 = vrot.slane %v85, %v92
    %v94 = vcombine.high %v93, %v93
    %v97 = vsel %vm79, %v93, 0.0
    %v98 = vsel %vm79, %v94, 0.0
    %v99 = vadd.f32 %v97, %v98
    %100 = vadd.xlane.f32.xlu0 %v99
    %v101 = vpop.xlane.xlu0 %100
    %v102 = vmul.f32 %v84, 0.00390625
    %v103 = vmul.f32 %v101, 0.00390625
    %v104 = vmul.f32 %v102, %v102
    %v105 = vsub.f32 %v103, %v104
    %v106 = vadd.f32 %v105, 1e-05
    %v107 = vrsqrt.pop %v106
    %v108 = vld [vmem:[#allocation7] sm:$0x3]
    %v109 = vld [vmem:[#allocation8] sm:$0x3]
    %v112 = vunpack.c.l.s4 269488144
    %v113 = vunpack.c.0.s8 %v112
    %v114 = vlaneseq
    %v115 = vshrl.u32 %v114, 7
    %v116 = vsub.s32 %v113, %v115
    %v117 = vrot.slane %v102, %v116
    %v119 = vsub.f32 %v67, %v117
    %v122 = vunpack.c.l.s4 269488144
    %v123 = vunpack.c.0.s8 %v122
    %v124 = vlaneseq
    %v125 = vshrl.u32 %v124, 7
    %v126 = vsub.s32 %v123, %v125
    %v127 = vrot.slane %v107, %v126
    %v129 = vmul.f32 %v119, %v127
    %v131 = vlaneseq
    %v132 = vshrl.u32 %v131, 7
    %v133 = vsub.s32 0, %v132
    %v134 = vrot.slane %v108, %v133
    %v135 = vlaneseq
    %v136 = vshrl.u32 %v135, 7
    %v137 = vsub.s32 1, %v136
    %v138 = vrot.slane %v108, %v137
    %v139 = vcombine.low %v134, %v138
    %v141 = vunpack.c.l.s4 1983009808
    %v142 = vunpack.c.0.s8 %v141
    %v143 = vlaneseq
    %v144 = vshrl.u32 %v143, 7
    %v145 = vsub.s32 %v142, %v144
    %v146 = vrot.slane %v139, %v145
    %v148 = vmul.f32 %v129, %v146
    %v150 = vlaneseq
    %v151 = vshrl.u32 %v150, 7
    %v152 = vsub.s32 0, %v151
    %v153 = vrot.slane %v109, %v152
    %v154 = vlaneseq
    %v155 = vshrl.u32 %v154, 7
    %v156 = vsub.s32 1, %v155
    %v157 = vrot.slane %v109, %v156
    %v158 = vcombine.low %v153, %v157
    %v160 = vunpack.c.l.s4 1983009808
    %v161 = vunpack.c.0.s8 %v160
    %v162 = vlaneseq
    %v163 = vshrl.u32 %v162, 7
    %v164 = vsub.s32 %v161, %v163
    %v165 = vrot.slane %v158, %v164
    %v167 = vadd.f32 %v148, %v165
    %168 = vst [vmem:[#allocation10] sm:$0xf] %v167
    // Predicated region
    $region34: #{tpu_custom_call.1} parent=1 // pred_check
      _
    $region35: #{tpu_custom_call.1} parent=1 // pred_check_branch
      %170 = sbr.rel (0) target = $region37
    $region36: #{tpu_custom_call.1} parent=1 // pred_region
      %s172 = ssub.s32 64, 64
      %173 = vsyncadd [#allocation4], %s172
      %s175 = sshll.u32 [#allocation10], 4
      %s176 = int_to_ptr.vmem [resolvable:$true] %s175
      %178 = dma.vmem_to_hbm [thread:$0]  %s176, 64, %s4, [#allocation4]
    $region37: #{tpu_custom_call.1} parent=1 // pred_fallthru
      _
    // Predicated region
    $region38: #{tpu_custom_call.1} parent=1 // pred_check
      _
    $region39: #{tpu_custom_call.1} parent=1 // pred_check_branch
      %180 = sbr.rel (0) target = $region41
    $region40: #{tpu_custom_call.1} parent=1 // pred_region
      %181 = dma.done [#allocation4], 64
    $region41: #{tpu_custom_call.1} parent=1 // pred_fallthru
      _
    %182 = vsyncpa [#allocation3], 1
    %183 = vsyncpa [#allocation6], 1
    %184 = vsyncpa [#allocation9], 1
    %185 = vsyncpa [#allocation4], 1

</llo_original>
